<compile_context>
chip_gen: v5e
topology: v5e:2x2
jax: 0.10.0
libtpu: 0.0.40
codegen_flags: <defaults>
</compile_context>

<pallas_src>
import jax
import jax.numpy as jnp
from jax.experimental import pallas as pl
from jax.experimental.pallas import tpu as pltpu

EMBED_DIMENSION = 300
MAX_NORM = float(EMBED_DIMENSION)  # nn.Embedding(max_norm=EMBED_DIMENSION)


def skipgram_matmul_kernel(x_ref, w_ref, b_ref, out_ref):
    # One vocab tile per grid step: out = x @ W_tile + bias_tile (single MXU matmul,
    # f32 accumulation regardless of streaming dtype).
    out_ref[...] = (
        jnp.dot(x_ref[...], w_ref[...], preferred_element_type=jnp.float32)
        + b_ref[...]
    ).astype(out_ref.dtype)


def prepare_linear_params(w_t, bias, *, tile_v, compute_dtype=jnp.bfloat16):
    """ONE-TIME (init) prep — keep this OUT of the per-step hot path.

    w_t:  (D, V) = torch Linear weight transposed.   bias: (V,)
    Returns (w_prepped (D, Vp) in compute_dtype, bias_prepped (1, Vp) f32) with Vp a
    multiple of tile_v (zero-padded columns; they are sliced off the output).
    """
    D, V = w_t.shape
    assert D == EMBED_DIMENSION
    assert tile_v % 128 == 0, "tile_v must be a multiple of 128 (lane width)"
    Vp = ((V + tile_v - 1) // tile_v) * tile_v
    w_p = jnp.zeros((D, Vp), compute_dtype).at[:, :V].set(w_t.astype(compute_dtype))
    b_p = jnp.zeros((1, Vp), jnp.float32).at[0, :V].set(bias.astype(jnp.float32))
    return w_p, b_p


def skipgram_forward(indices, emb_table, w_prepped, bias_prepped, *, tile_v):
    """indices: (B,) int32; emb_table: (V, D); w_prepped/bias_prepped from
    prepare_linear_params. Returns logits (B, V) float32."""
    B = indices.shape[0]
    V, D = emb_table.shape
    D2, Vp = w_prepped.shape
    assert D == D2 == EMBED_DIMENSION
    assert Vp % tile_v == 0 and Vp >= V
    compute_dtype = w_prepped.dtype

    # ---- hoisted embedding gather + nn.Embedding(max_norm, p=2) renorm (tiny, f32) ----
    # TODO(synk): PyTorch renormalizes the embedding *weight rows in place* as a lookup
    # side effect; here only the gathered activations are scaled (forward output matches).
    x = jnp.take(emb_table.astype(jnp.float32), indices.astype(jnp.int32), axis=0)  # (B, D)
    norm = jnp.sqrt(jnp.sum(x * x, axis=1, keepdims=True))
    x = x * jnp.where(norm > MAX_NORM, MAX_NORM / (norm + 1e-7), 1.0)

    # ---- pad B only to sublane alignment (8 for f32 streams, 16 for 16-bit streams) ----
    sub = 16 if jnp.dtype(compute_dtype).itemsize == 2 else 8
    Bp = ((B + sub - 1) // sub) * sub
    x_p = jnp.zeros((Bp, D), compute_dtype).at[:B, :].set(x.astype(compute_dtype))

    grid_len = Vp // tile_v

    out = pl.pallas_call(
        skipgram_matmul_kernel,
        out_shape=jax.ShapeDtypeStruct((Bp, Vp), jnp.float32),
        grid_spec=pltpu.PrefetchScalarGridSpec(
            num_scalar_prefetch=0,
            grid=(grid_len,),                                 # tile the vocab (output) dim
            in_specs=[
                pl.BlockSpec((Bp, D), lambda j: (0, 0)),      # x: tiny, resident every step
                pl.BlockSpec((D, tile_v), lambda j: (0, j)),  # stream big W slabs (no K pad)
                pl.BlockSpec((1, tile_v), lambda j: (0, j)),  # matching bias tile (f32)
            ],
            out_specs=pl.BlockSpec((Bp, tile_v), lambda j: (0, j)),  # lane-dense output
        ),
        compiler_params=pltpu.CompilerParams(
            dimension_semantics=("parallel",),                # megacore-shard vocab tiles
            vmem_limit_bytes=48 * 1024 * 1024,                # headroom under v7x 64 MiB
        ),
    )(x_p, w_prepped, bias_prepped)

    return out[:B, :V]


def skipgram_reference(indices, emb_table, w_prepped, bias_prepped, V):
    # Reference uses the same (bf16-stored) parameters so only accumulation order differs.
    x = emb_table[indices].astype(jnp.float32)
    norm = jnp.sqrt(jnp.sum(x * x, axis=1, keepdims=True))
    x = x * jnp.where(norm > MAX_NORM, MAX_NORM / (norm + 1e-7), 1.0)
    x = x.astype(w_prepped.dtype).astype(jnp.float32)
    w = w_prepped[:, :V].astype(jnp.float32)
    b = bias_prepped[0, :V]
    return jnp.dot(x, w, precision=jax.lax.Precision.HIGHEST) + b


if __name__ == "__main__":
    VOCAB = 2048   # small synthetic vocab for the demo
    B = 8          # batch of token ids
    D = EMBED_DIMENSION
    # Demo tile keeps the grid length >= 2 (megacore). For real vocabs use
    # tile_v = 4096-8192 (bf16) so each W-tile DMA is >= 2-4 us.
    TILE_V = 1024

    key = jax.random.PRNGKey(0)
    k_idx, k_emb, k_w, k_b = jax.random.split(key, 4)

    # deterministic parameter init (shapes per the module's __init__)
    emb_table = jax.random.normal(k_emb, (VOCAB, D), dtype=jnp.float32)      # nn.Embedding ~ N(0,1)
    # make row 0 exceed max_norm so the renorm branch is actually exercised
    emb_table = emb_table.at[0, :].set(emb_table[0, :] * 100.0)              # ||row0|| ~ 1700 > 300
    bound = 1.0 / jnp.sqrt(jnp.float32(D))                                   # nn.Linear U(-1/sqrt(D), 1/sqrt(D))
    w_t = jax.random.uniform(k_w, (D, VOCAB), minval=-bound, maxval=bound,
                             dtype=jnp.float32)                              # (D, V) = torch W.T
    bias = jax.random.uniform(k_b, (VOCAB,), minval=-bound, maxval=bound,
                              dtype=jnp.float32)

    indices = jax.random.randint(k_idx, (B,), 0, VOCAB, dtype=jnp.int32)
    indices = indices.at[0].set(0)   # include the over-norm row in the batch

    # One-time weight prep (outside the hot path): cast to bf16 stream dtype, pad vocab.
    w_prepped, bias_prepped = prepare_linear_params(
        w_t, bias, tile_v=TILE_V, compute_dtype=jnp.bfloat16)
    w_prepped, bias_prepped = jax.block_until_ready((w_prepped, bias_prepped))

    out = skipgram_forward(indices, emb_table, w_prepped, bias_prepped, tile_v=TILE_V)
    out = jax.block_until_ready(out)

    ref = skipgram_reference(indices, emb_table, w_prepped, bias_prepped, VOCAB)
    assert out.shape == (B, VOCAB)
    # bf16 inputs are shared with the reference; remaining diff is f32 accumulation order.
    assert jnp.allclose(out, ref, atol=5e-3, rtol=1e-3), float(jnp.max(jnp.abs(out - ref)))

    print("KERNEL_OK")
</pallas_src>

<mosaic_0001>
module attributes {stable_mosaic.version = 11 : i64} {
  func.func @skipgram_matmul_kernel(%arg0: i32, %arg1: memref<16x300xbf16, #tpu.memory_space<vmem>>, %arg2: memref<300x1024xbf16, #tpu.memory_space<vmem>>, %arg3: memref<1x1024xf32, #tpu.memory_space<vmem>>, %arg4: memref<16x1024xf32, #tpu.memory_space<vmem>>) attributes {dimension_semantics = [#tpu.dimension_semantics<parallel>], iteration_bounds = array<i64: 2>, scalar_prefetch = 0 : i64, scratch_operands = 0 : i64, tpu.core_type = #tpu.core_type<tc>, window_params = [{pipeline_mode = #tpu.pipeline_mode<synchronous>, transform_indices = @transform_0, window_bounds = array<i64: 16, 300>}, {transform_indices = @transform_1, window_bounds = array<i64: 300, 1024>}, {transform_indices = @transform_2, window_bounds = array<i64: 1, 1024>}, {transform_indices = @transform_3, window_bounds = array<i64: 16, 1024>}]} {
    %c0 = arith.constant 0 : index
    %c0_0 = arith.constant 0 : index
    %0 = vector.load %arg1[%c0, %c0_0] : memref<16x300xbf16, #tpu.memory_space<vmem>>, vector<16x300xbf16>
    %c0_1 = arith.constant 0 : index
    %c0_2 = arith.constant 0 : index
    %1 = vector.load %arg2[%c0_1, %c0_2] : memref<300x1024xbf16, #tpu.memory_space<vmem>>, vector<300x1024xbf16>
    %cst = arith.constant dense<0.000000e+00> : vector<16x1024xf32>
    %2 = tpu.matmul %0, %1, %cst {dimension_numbers = #tpu.dot_dimension_numbers<[1], [0], [0], [1], [0, 0, 1, 1], [], []>} : vector<16x300xbf16>, vector<300x1024xbf16>, vector<16x1024xf32> -> vector<16x1024xf32>
    %c0_3 = arith.constant 0 : index
    %c0_4 = arith.constant 0 : index
    %3 = vector.load %arg3[%c0_3, %c0_4] : memref<1x1024xf32, #tpu.memory_space<vmem>>, vector<1x1024xf32>
    %4 = vector.broadcast %3 : vector<1x1024xf32> to vector<16x1024xf32>
    %5 = arith.addf %2, %4 : vector<16x1024xf32>
    %c0_5 = arith.constant 0 : index
    %c0_6 = arith.constant 0 : index
    %6 = vector.load %arg4[%c0_5, %c0_6] : memref<16x1024xf32, #tpu.memory_space<vmem>>, vector<16x1024xf32>
    tpu.vector_store %arg4[%c0_5, %c0_6], %5 {strides = array<i32>} : memref<16x1024xf32, #tpu.memory_space<vmem>>, vector<16x1024xf32>,
    return
  }
  func.func @transform_0(%arg0: i32) -> (i32, i32) {
    %c0_i32 = arith.constant 0 : i32
    %c0_i32_0 = arith.constant 0 : i32
    %c0_i32_1 = arith.constant 0 : i32
    return %c0_i32, %c0_i32_0 : i32, i32
  }
  func.func @transform_1(%arg0: i32) -> (i32, i32) {
    %c0_i32 = arith.constant 0 : i32
    %c0_i32_0 = arith.constant 0 : i32
    return %c0_i32, %arg0 : i32, i32
  }
  func.func @transform_2(%arg0: i32) -> (i32, i32) {
    %c0_i32 = arith.constant 0 : i32
    %c0_i32_0 = arith.constant 0 : i32
    return %c0_i32, %arg0 : i32, i32
  }
  func.func @transform_3(%arg0: i32) -> (i32, i32) {
    %c0_i32 = arith.constant 0 : i32
    %c0_i32_0 = arith.constant 0 : i32
    return %c0_i32, %arg0 : i32, i32
  }
}

</mosaic_0001>

<llo_original>
// kernel: tpu_custom_call.1
$region0: #{tpu_custom_call.1}
  #allocation0 [shape = 'u32[]', space=smem, size = 0x4, offset = 0x4, fixed_abs, tag = 'smem constant byte address 0x4 - core index']
  #allocation1 [shape = 'u32[72,128]{1,0:T(1,128)}', space=vmem, size = 0x9000, scoped, tag = 'internal scratch']
  %s0 = inlined_call_operand.hbm [shape: bf16[16,300], index: 0, kind: input, shape index: {}]
  %s1 = inlined_call_operand.hbm [shape: bf16[300,2048], index: 1, kind: input, shape index: {}]
  %s2 = inlined_call_operand.hbm [shape: f32[1,2048], index: 2, kind: input, shape index: {}]
  %s3 = inlined_call_operand.hbm [shape: f32[16,2048], index: 3, kind: output, shape index: {}]
  %s4 = sld [smem:[#allocation0]]
  $region57: #{tpu_custom_call.1} parent=0
    _
  %s6 = ssub.s32 1, %s4
  %s7 = scalar_select 0, %s6, %s4
  $region1: #{tpu_custom_call.1} parent=0
    #allocation2 [shape = 'u8[12288]{0}', space=vmem, size = 0x3000, scoped, tag = 'input window, operand 0, single buffered']
    #allocation3 [shape = 's32[2]{0}', space=sflag, size = 0x8, scoped, tag = 'scoped memory for tpu_custom_call.1']
    #allocation4 [shape = 's32[2]{0}', space=sflag, size = 0x8, scoped, tag = 'scoped memory for tpu_custom_call.1']
    #allocation5 [shape = 'u8[1245184]{0}', space=vmem, size = 0x130000, scoped, tag = 'input window, operand 1']
    #allocation6 [shape = 's32[2]{0}', space=sflag, size = 0x8, scoped, tag = 'scoped memory for tpu_custom_call.1']
    #allocation7 [shape = 'u8[8192]{0}', space=vmem, size = 0x2000, scoped, tag = 'input window, operand 2']
    #allocation8 [shape = 'u8[131072]{0}', space=vmem, size = 0x20000, scoped, tag = 'output window, operand 0']
    %8 = vsyncpa [#allocation3], 0
    %9 = vsyncpa [#allocation6], 0
    %s10 = scalar_lea.sflag [#allocation6], 1
    %11 = vsyncpa %s10, 0
    %12 = vsyncpa [#allocation4], 0
    %s13 = scalar_lea.sflag [#allocation4], 1
    %14 = vsyncpa %s13, 0
    loop: start=0, step=1, limit=4
    $region2: #{tpu_custom_call.1} parent=1 // loop_pre_header
      _
    $region3: #{tpu_custom_call.1} parent=1 // loop_header
      %s16 = sphi 0, %s20
      %p17 = scmp.ge.s32.totalorder %s16, 4
      %s24 = sphi 0, %s24
      %s26 = sphi 0, %s24
      %s27 = sphi 0, %s26
      %s41 = sphi 0, %s27
      %s47 = sphi 0, %s49
      %s50 = sphi 0, %s47
      %s51 = sphi 0, %s50
      %s67 = sphi 0, %s51
      %s73 = sphi 0, %s75
      %s76 = sphi 0, %s73
      %s77 = sphi 0, %s76
      %s93 = sphi 0, %s77
      %s99 = sphi 0, %s101
      %s102 = sphi 0, %s99
      %s103 = sphi 0, %s102
      %s119 = sphi 0, %s103
    $region4: #{tpu_custom_call.1} parent=1 // loop_header_branch
      %19 = sbr.rel (%p17) target = $region8
    $region5: #{tpu_custom_call.1} parent=1 // loop_body
      %s21 = ssub.s32 %s16, 1
      %s22 = ssub.s32 %s16, 2
      %s23 = sadd.s32 %s16, 1
      %s25 = sadd.s32 %s24, 1
      %p28 = scmp.eq.s32.totalorder %s16, 1
      %p29 = scmp.ne.s32.totalorder %s24, %s26
      %p30 = scmp.eq.s32.totalorder %s16, 0
      %p31 = por %p29, %p30
      %p32 = scmp.ne.s32.totalorder %s24, %s26
      %p33 = scmp.eq.s32.totalorder %s21, 1
      %p34 = por %p32, %p33
      %p35 = scmp.ne.s32.totalorder %s26, %s27
      %p36 = scmp.eq.s32.totalorder %s21, 0
      %p37 = por %p35, %p36
      %p38 = scmp.ne.s32.totalorder %s26, %s27
      %p39 = scmp.eq.s32.totalorder %s22, 1
      %p40 = por %p38, %p39
      %p42 = scmp.ne.s32.totalorder %s27, %s41
      %p43 = scmp.eq.s32.totalorder %s22, 0
      %p44 = por %p42, %p43
      %s45 = ssub.s32 %s16, %s23
      %p46 = scmp.eq.s32.totalorder %s45, 0
      %s48 = sadd.s32 %s47, 1
      %s49 = scalar_select %p46, %s47, %s48
      %p52 = pneg %p46
      %p53 = scmp.eq.s32.totalorder %s16, 1
      %p54 = por %p52, %p53
      %p55 = scmp.ne.s32.totalorder %s47, %s50
      %p56 = scmp.eq.s32.totalorder %s16, 0
      %p57 = por %p55, %p56
      %p58 = scmp.ne.s32.totalorder %s47, %s50
      %p59 = scmp.eq.s32.totalorder %s21, 1
      %p60 = por %p58, %p59
      %p61 = scmp.ne.s32.totalorder %s50, %s51
      %p62 = scmp.eq.s32.totalorder %s21, 0
      %p63 = por %p61, %p62
      %p64 = scmp.ne.s32.totalorder %s50, %s51
      %p65 = scmp.eq.s32.totalorder %s22, 1
      %p66 = por %p64, %p65
      %p68 = scmp.ne.s32.totalorder %s51, %s67
      %p69 = scmp.eq.s32.totalorder %s22, 0
      %p70 = por %p68, %p69
      %s71 = ssub.s32 %s16, %s23
      %p72 = scmp.eq.s32.totalorder %s71, 0
      %s74 = sadd.s32 %s73, 1
      %s75 = scalar_select %p72, %s73, %s74
      %p78 = pneg %p72
      %p79 = scmp.eq.s32.totalorder %s16, 1
      %p80 = por %p78, %p79
      %p81 = scmp.ne.s32.totalorder %s73, %s76
      %p82 = scmp.eq.s32.totalorder %s16, 0
      %p83 = por %p81, %p82
      %p84 = scmp.ne.s32.totalorder %s73, %s76
      %p85 = scmp.eq.s32.totalorder %s21, 1
      %p86 = por %p84, %p85
      %p87 = scmp.ne.s32.totalorder %s76, %s77
      %p88 = scmp.eq.s32.totalorder %s21, 0
      %p89 = por %p87, %p88
      %p90 = scmp.ne.s32.totalorder %s76, %s77
      %p91 = scmp.eq.s32.totalorder %s22, 1
      %p92 = por %p90, %p91
      %p94 = scmp.ne.s32.totalorder %s77, %s93
      %p95 = scmp.eq.s32.totalorder %s22, 0
      %p96 = por %p94, %p95
      %s97 = ssub.s32 %s16, %s23
      %p98 = scmp.eq.s32.totalorder %s97, 0
      %s100 = sadd.s32 %s99, 1
      %s101 = scalar_select %p98, %s99, %s100
      %p104 = pneg %p98
      %p105 = scmp.eq.s32.totalorder %s16, 1
      %p106 = por %p104, %p105
      %p107 = scmp.ne.s32.totalorder %s99, %s102
      %p108 = scmp.eq.s32.totalorder %s16, 0
      %p109 = por %p107, %p108
      %p110 = scmp.ne.s32.totalorder %s99, %s102
      %p111 = scmp.eq.s32.totalorder %s21, 1
      %p112 = por %p110, %p111
      %p113 = scmp.ne.s32.totalorder %s102, %s103
      %p114 = scmp.eq.s32.totalorder %s21, 0
      %p115 = por %p113, %p114
      %p116 = scmp.ne.s32.totalorder %s102, %s103
      %p117 = scmp.eq.s32.totalorder %s22, 1
      %p118 = por %p116, %p117
      %p120 = scmp.ne.s32.totalorder %s103, %s119
      %p121 = scmp.eq.s32.totalorder %s22, 0
      %p122 = por %p120, %p121
      %p123 = scmp.le.s32.totalorder 1, %s16
      %p124 = scmp.lt.s32.totalorder %s16, 3
      %p125 = pnand %p123, %p124
      %p126 = pneg %p125
      // Predicated region
      $region9: #{tpu_custom_call.1} parent=5 // pred_check
        _
      $region10: #{tpu_custom_call.1} parent=5 // pred_check_branch
        %128 = sbr.rel (%p125) target = $region12
      $region11: #{tpu_custom_call.1} parent=5 // pred_region
        %s129 = ssub.s32 %s16, 1
        // Predicated region
        $region13: #{tpu_custom_call.1} parent=11 // pred_check
          %p130 = pneg %p37
        $region14: #{tpu_custom_call.1} parent=11 // pred_check_branch
          %132 = sbr.rel (%p130) target = $region16
        $region15: #{tpu_custom_call.1} parent=11 // pred_region
          %134 = vsyncadd [#allocation3], 0
          %s135 = sshll.u32 %s0, 4
          %s136 = int_to_ptr.hbm [resolvable:$true] %s135
          %s137 = sshll.u32 [#allocation2], 4
          %s138 = int_to_ptr.vmem [resolvable:$true] %s137
          %143 = dma.hbm_to_vmem [thread:$0]  %s136, 384, %s138, [#allocation3], 192, 192, 12
        $region16: #{tpu_custom_call.1} parent=11 // pred_fallthru
          _
      $region12: #{tpu_custom_call.1} parent=5 // pred_fallthru
        _
      %p144 = scmp.lt.s32.totalorder %s16, 2
      // Predicated region
      $region17: #{tpu_custom_call.1} parent=5 // pred_check
        %p145 = pneg %p144
      $region18: #{tpu_custom_call.1} parent=5 // pred_check_branch
        %147 = sbr.rel (%p145) target = $region20
      $region19: #{tpu_custom_call.1} parent=5 // pred_region
        // Predicated region
        $region21: #{tpu_custom_call.1} parent=19 // pred_check
          %p148 = pneg %p57
        $region22: #{tpu_custom_call.1} parent=19 // pred_check_branch
          %150 = sbr.rel (%p148) target = $region24
        $region23: #{tpu_custom_call.1} parent=19 // pred_region
          %s151 = sand.u32 %s16, 1
          %s152 = scalar_lea.sflag [#allocation6], %s151
          %s153 = sand.u32 %s47, 1
          %s154 = smul.addr %s153, 1216
          %s155 = scalar_lea.vmem [#allocation5], %s154
          %s156 = smul.u32 8, %s16
          %158 = vsyncadd %s152, 0
          %s159 = smul.addr %s156, 4
          %s160 = scalar_lea.hbm %s1, %s159
          %s161 = sshll.u32 %s160, 4
          %s162 = int_to_ptr.hbm [resolvable:$true] %s161
          %s163 = sshll.u32 %s155, 4
          %s164 = int_to_ptr.vmem [resolvable:$true] %s163
          %169 = dma.hbm_to_vmem [thread:$0]  %s162, 19456, %s164, %s152, 1024, 512, 32
        $region24: #{tpu_custom_call.1} parent=19 // pred_fallthru
          _
        // Predicated region
        $region25: #{tpu_custom_call.1} parent=19 // pred_check
          %p170 = pneg %p83
        $region26: #{tpu_custom_call.1} parent=19 // pred_check_branch
          %172 = sbr.rel (%p170) target = $region28
        $region27: #{tpu_custom_call.1} parent=19 // pred_region
          %s173 = sand.u32 %s16, 1
          %s174 = scalar_lea.sflag [#allocation6], %s173
          %s175 = sand.u32 %s73, 1
          %s176 = smul.addr %s175, 8
          %s177 = scalar_lea.vmem [#allocation7], %s176
          %s178 = smul.u32 8, %s16
          %180 = vsyncadd %s174, 0
          %s181 = scalar_lea.hbm %s2, %s178
          %s183 = sshll.u32 %s181, 4
          %s184 = int_to_ptr.hbm [resolvable:$true] %s183
          %s185 = sshll.u32 %s177, 4
          %s186 = int_to_ptr.vmem [resolvable:$true] %s185
          %188 = dma.hbm_to_vmem [thread:$0]  %s184, 128, %s186, %s174
        $region28: #{tpu_custom_call.1} parent=19 // pred_fallthru
          _
      $region20: #{tpu_custom_call.1} parent=5 // pred_fallthru
        _
      %p189 = scmp.le.s32.totalorder 1, %s16
      %p190 = scmp.lt.s32.totalorder %s16, 3
      %p191 = pnand %p189, %p190
      %p192 = pneg %p191
      // Predicated region
      $region29: #{tpu_custom_call.1} parent=5 // pred_check
        _
      $region30: #{tpu_custom_call.1} parent=5 // pred_check_branch
        %194 = sbr.rel (%p191) target = $region32
      $region31: #{tpu_custom_call.1} parent=5 // pred_region
        %s195 = ssub.s32 %s16, 1
        // Predicated region
        $region33: #{tpu_custom_call.1} parent=31 // pred_check
          %p196 = pneg %p37
        $region34: #{tpu_custom_call.1} parent=31 // pred_check_branch
          %198 = sbr.rel (%p196) target = $region36
        $region35: #{tpu_custom_call.1} parent=31 // pred_region
          %200 = dma.done [#allocation3], 384
        $region36: #{tpu_custom_call.1} parent=31 // pred_fallthru
          _
        %s201 = sand.u32 %s21, 1
        %s202 = scalar_lea.sflag [#allocation6], %s201
        %s203 = sand.u32 %s50, 1
        %s204 = smul.addr %s203, 1216
        %s205 = scalar_lea.vmem [#allocation5], %s204
        // Predicated region
        $region37: #{tpu_custom_call.1} parent=31 // pred_check
          %p206 = pneg %p63
        $region38: #{tpu_custom_call.1} parent=31 // pred_check_branch
          %208 = sbr.rel (%p206) target = $region40
        $region39: #{tpu_custom_call.1} parent=31 // pred_region
          %210 = dma.done %s202, 19456
        $region40: #{tpu_custom_call.1} parent=31 // pred_fallthru
          _
        %s211 = sand.u32 %s21, 1
        %s212 = scalar_lea.sflag [#allocation6], %s211
        %s213 = sand.u32 %s76, 1
        %s214 = smul.addr %s213, 8
        %s215 = scalar_lea.vmem [#allocation7], %s214
        // Predicated region
        $region41: #{tpu_custom_call.1} parent=31 // pred_check
          %p216 = pneg %p89
        $region42: #{tpu_custom_call.1} parent=31 // pred_check_branch
          %218 = sbr.rel (%p216) target = $region44
        $region43: #{tpu_custom_call.1} parent=31 // pred_region
          %220 = dma.done %s212, 128
        $region44: #{tpu_custom_call.1} parent=31 // pred_fallthru
          _
        %p221 = pneg %p37
        %p222 = pneg %p34
        %s223 = sand.u32 %s21, 1
        %s224 = scalar_lea.sflag [#allocation6], %s223
        %s225 = sand.u32 %s50, 1
        %s226 = smul.addr %s225, 1216
        %s227 = scalar_lea.vmem [#allocation5], %s226
        %p228 = pneg %p63
        %p229 = pneg %p60
        %s230 = sand.u32 %s21, 1
        %s231 = scalar_lea.sflag [#allocation6], %s230
        %s232 = sand.u32 %s76, 1
        %s233 = smul.addr %s232, 8
        %s234 = scalar_lea.vmem [#allocation7], %s233
        %p235 = pneg %p89
        %p236 = pneg %p86
        %p237 = pneg %p115
        %p238 = pneg %p112
        %s239 = sand.u32 %s102, 1
        %s240 = scalar_lea.sflag [#allocation4], %s239
        %s241 = sand.u32 %s102, 1
        %s242 = smul.addr %s241, 128
        %s243 = scalar_lea.vmem [#allocation8], %s242
        %s244 = smul.u32 8, %s21
        %s245 = smul.u32 8, %s21
        %s246 = smul.u32 8, %s21
        %v248 = vld [vmem:[#allocation2] sm:$0xff]
        %v249 = vld [vmem:[#allocation2 + $0x8] sm:$0xf]
        %v250 = vld [vmem:[#allocation2 + $0xc] sm:$0xff]
        %v251 = vld [vmem:[#allocation2 + $0x14] sm:$0xf]
        %v252 = vld [vmem:[%s205] sm:$0xff]
        %v253 = vld [vmem:[%s205 + $0x8] sm:$0xff]
        %v254 = vld [vmem:[%s205 + $0x10] sm:$0xff]
        %v255 = vld [vmem:[%s205 + $0x18] sm:$0xff]
        %v256 = vld [vmem:[%s205 + $0x20] sm:$0xff]
        %v257 = vld [vmem:[%s205 + $0x28] sm:$0xff]
        %v258 = vld [vmem:[%s205 + $0x30] sm:$0xff]
        %v259 = vld [vmem:[%s205 + $0x38] sm:$0xff]
        %v260 = vld [vmem:[%s205 + $0x40] sm:$0xff]
        %v261 = vld [vmem:[%s205 + $0x48] sm:$0xff]
        %v262 = vld [vmem:[%s205 + $0x50] sm:$0xff]
        %v263 = vld [vmem:[%s205 + $0x58] sm:$0xff]
        %v264 = vld [vmem:[%s205 + $0x60] sm:$0xff]
        %v265 = vld [vmem:[%s205 + $0x68] sm:$0xff]
        %v266 = vld [vmem:[%s205 + $0x70] sm:$0xff]
        %v267 = vld [vmem:[%s205 + $0x78] sm:$0xff]
        %v268 = vld [vmem:[%s205 + $0x80] sm:$0xff]
        %v269 = vld [vmem:[%s205 + $0x88] sm:$0xff]
        %v270 = vld [vmem:[%s205 + $0x90] sm:$0xff]
        %v271 = vld [vmem:[%s205 + $0x98] sm:$0xff]
        %v272 = vld [vmem:[%s205 + $0xa0] sm:$0xff]
        %v273 = vld [vmem:[%s205 + $0xa8] sm:$0xff]
        %v274 = vld [vmem:[%s205 + $0xb0] sm:$0xff]
        %v275 = vld [vmem:[%s205 + $0xb8] sm:$0xff]
        %v276 = vld [vmem:[%s205 + $0xc0] sm:$0xff]
        %v277 = vld [vmem:[%s205 + $0xc8] sm:$0xff]
        %v278 = vld [vmem:[%s205 + $0xd0] sm:$0xff]
        %v279 = vld [vmem:[%s205 + $0xd8] sm:$0xff]
        %v280 = vld [vmem:[%s205 + $0xe0] sm:$0xff]
        %v281 = vld [vmem:[%s205 + $0xe8] sm:$0xff]
        %v282 = vld [vmem:[%s205 + $0xf0] sm:$0xff]
        %v283 = vld [vmem:[%s205 + $0xf8] sm:$0xff]
        %v284 = vld [vmem:[%s205 + $0x100] sm:$0xff]
        %v285 = vld [vmem:[%s205 + $0x108] sm:$0xff]
        %v286 = vld [vmem:[%s205 + $0x110] sm:$0xff]
        %v287 = vld [vmem:[%s205 + $0x118] sm:$0xff]
        %v288 = vld [vmem:[%s205 + $0x120] sm:$0xff]
        %v289 = vld [vmem:[%s205 + $0x128] sm:$0xff]
        %v290 = vld [vmem:[%s205 + $0x130] sm:$0xff]
        %v291 = vld [vmem:[%s205 + $0x138] sm:$0xff]
        %v292 = vld [vmem:[%s205 + $0x140] sm:$0xff]
        %v293 = vld [vmem:[%s205 + $0x148] sm:$0xff]
        %v294 = vld [vmem:[%s205 + $0x150] sm:$0xff]
        %v295 = vld [vmem:[%s205 + $0x158] sm:$0xff]
        %v296 = vld [vmem:[%s205 + $0x160] sm:$0xff]
        %v297 = vld [vmem:[%s205 + $0x168] sm:$0xff]
        %v298 = vld [vmem:[%s205 + $0x170] sm:$0xff]
        %v299 = vld [vmem:[%s205 + $0x178] sm:$0xff]
        %v300 = vld [vmem:[%s205 + $0x180] sm:$0xff]
        %v301 = vld [vmem:[%s205 + $0x188] sm:$0xff]
        %v302 = vld [vmem:[%s205 + $0x190] sm:$0xff]
        %v303 = vld [vmem:[%s205 + $0x198] sm:$0xff]
        %v304 = vld [vmem:[%s205 + $0x1a0] sm:$0xff]
        %v305 = vld [vmem:[%s205 + $0x1a8] sm:$0xff]
        %v306 = vld [vmem:[%s205 + $0x1b0] sm:$0xff]
        %v307 = vld [vmem:[%s205 + $0x1b8] sm:$0xff]
        %v308 = vld [vmem:[%s205 + $0x1c0] sm:$0xff]
        %v309 = vld [vmem:[%s205 + $0x1c8] sm:$0xff]
        %v310 = vld [vmem:[%s205 + $0x1d0] sm:$0xff]
        %v311 = vld [vmem:[%s205 + $0x1d8] sm:$0xff]
        %v312 = vld [vmem:[%s205 + $0x1e0] sm:$0xff]
        %v313 = vld [vmem:[%s205 + $0x1e8] sm:$0xff]
        %v314 = vld [vmem:[%s205 + $0x1f0] sm:$0xff]
        %v315 = vld [vmem:[%s205 + $0x1f8] sm:$0xff]
        %v316 = vld [vmem:[%s205 + $0x200] sm:$0xff]
        %v317 = vld [vmem:[%s205 + $0x208] sm:$0xff]
        %v318 = vld [vmem:[%s205 + $0x210] sm:$0xff]
        %v319 = vld [vmem:[%s205 + $0x218] sm:$0xff]
        %v320 = vld [vmem:[%s205 + $0x220] sm:$0xff]
        %v321 = vld [vmem:[%s205 + $0x228] sm:$0xff]
        %v322 = vld [vmem:[%s205 + $0x230] sm:$0xff]
        %v323 = vld [vmem:[%s205 + $0x238] sm:$0xff]
        %v324 = vld [vmem:[%s205 + $0x240] sm:$0xff]
        %v325 = vld [vmem:[%s205 + $0x248] sm:$0xff]
        %v326 = vld [vmem:[%s205 + $0x250] sm:$0xff]
        %v327 = vld [vmem:[%s205 + $0x258] sm:$0xff]
        %v328 = vld [vmem:[%s205 + $0x260] sm:$0xff]
        %v329 = vld [vmem:[%s205 + $0x268] sm:$0xff]
        %v330 = vld [vmem:[%s205 + $0x270] sm:$0xff]
        %v331 = vld [vmem:[%s205 + $0x278] sm:$0xff]
        %v332 = vld [vmem:[%s205 + $0x280] sm:$0xff]
        %v333 = vld [vmem:[%s205 + $0x288] sm:$0xff]
        %v334 = vld [vmem:[%s205 + $0x290] sm:$0xff]
        %v335 = vld [vmem:[%s205 + $0x298] sm:$0xff]
        %v336 = vld [vmem:[%s205 + $0x2a0] sm:$0xff]
        %v337 = vld [vmem:[%s205 + $0x2a8] sm:$0xff]
        %v338 = vld [vmem:[%s205 + $0x2b0] sm:$0xff]
        %v339 = vld [vmem:[%s205 + $0x2b8] sm:$0xff]
        %v340 = vld [vmem:[%s205 + $0x2c0] sm:$0xff]
        %v341 = vld [vmem:[%s205 + $0x2c8] sm:$0xff]
        %v342 = vld [vmem:[%s205 + $0x2d0] sm:$0xff]
        %v343 = vld [vmem:[%s205 + $0x2d8] sm:$0xff]
        %v344 = vld [vmem:[%s205 + $0x2e0] sm:$0xff]
        %v345 = vld [vmem:[%s205 + $0x2e8] sm:$0xff]
        %v346 = vld [vmem:[%s205 + $0x2f0] sm:$0xff]
        %v347 = vld [vmem:[%s205 + $0x2f8] sm:$0xff]
        %v348 = vld [vmem:[%s205 + $0x300] sm:$0xff]
        %v349 = vld [vmem:[%s205 + $0x308] sm:$0xff]
        %v350 = vld [vmem:[%s205 + $0x310] sm:$0xff]
        %v351 = vld [vmem:[%s205 + $0x318] sm:$0xff]
        %v352 = vld [vmem:[%s205 + $0x320] sm:$0xff]
        %v353 = vld [vmem:[%s205 + $0x328] sm:$0xff]
        %v354 = vld [vmem:[%s205 + $0x330] sm:$0xff]
        %v355 = vld [vmem:[%s205 + $0x338] sm:$0xff]
        %v356 = vld [vmem:[%s205 + $0x340] sm:$0xff]
        %v357 = vld [vmem:[%s205 + $0x348] sm:$0xff]
        %v358 = vld [vmem:[%s205 + $0x350] sm:$0xff]
        %v359 = vld [vmem:[%s205 + $0x358] sm:$0xff]
        %v360 = vld [vmem:[%s205 + $0x360] sm:$0xff]
        %v361 = vld [vmem:[%s205 + $0x368] sm:$0xff]
        %v362 = vld [vmem:[%s205 + $0x370] sm:$0xff]
        %v363 = vld [vmem:[%s205 + $0x378] sm:$0xff]
        %v364 = vld [vmem:[%s205 + $0x380] sm:$0xff]
        %v365 = vld [vmem:[%s205 + $0x388] sm:$0xff]
        %v366 = vld [vmem:[%s205 + $0x390] sm:$0xff]
        %v367 = vld [vmem:[%s205 + $0x398] sm:$0xff]
        %v368 = vld [vmem:[%s205 + $0x3a0] sm:$0xff]
        %v369 = vld [vmem:[%s205 + $0x3a8] sm:$0xff]
        %v370 = vld [vmem:[%s205 + $0x3b0] sm:$0xff]
        %v371 = vld [vmem:[%s205 + $0x3b8] sm:$0xff]
        %v372 = vld [vmem:[%s205 + $0x3c0] sm:$0xff]
        %v373 = vld [vmem:[%s205 + $0x3c8] sm:$0xff]
        %v374 = vld [vmem:[%s205 + $0x3d0] sm:$0xff]
        %v375 = vld [vmem:[%s205 + $0x3d8] sm:$0xff]
        %v376 = vld [vmem:[%s205 + $0x3e0] sm:$0xff]
        %v377 = vld [vmem:[%s205 + $0x3e8] sm:$0xff]
        %v378 = vld [vmem:[%s205 + $0x3f0] sm:$0xff]
        %v379 = vld [vmem:[%s205 + $0x3f8] sm:$0xff]
        %v380 = vld [vmem:[%s205 + $0x400] sm:$0xff]
        %v381 = vld [vmem:[%s205 + $0x408] sm:$0xff]
        %v382 = vld [vmem:[%s205 + $0x410] sm:$0xff]
        %v383 = vld [vmem:[%s205 + $0x418] sm:$0xff]
        %v384 = vld [vmem:[%s205 + $0x420] sm:$0xff]
        %v385 = vld [vmem:[%s205 + $0x428] sm:$0xff]
        %v386 = vld [vmem:[%s205 + $0x430] sm:$0xff]
        %v387 = vld [vmem:[%s205 + $0x438] sm:$0xff]
        %v388 = vld [vmem:[%s205 + $0x440] sm:$0xff]
        %v389 = vld [vmem:[%s205 + $0x448] sm:$0xff]
        %v390 = vld [vmem:[%s205 + $0x450] sm:$0xff]
        %v391 = vld [vmem:[%s205 + $0x458] sm:$0xff]
        %v392 = vld [vmem:[%s205 + $0x460] sm:$0xff]
        %v393 = vld [vmem:[%s205 + $0x468] sm:$0xff]
        %v394 = vld [vmem:[%s205 + $0x470] sm:$0xff]
        %v395 = vld [vmem:[%s205 + $0x478] sm:$0xff]
        %v396 = vld [vmem:[%s205 + $0x480] sm:$0xff]
        %v397 = vld [vmem:[%s205 + $0x488] sm:$0xff]
        %v398 = vld [vmem:[%s205 + $0x490] sm:$0xff]
        %v399 = vld [vmem:[%s205 + $0x498] sm:$0xff]
        %v400 = vld [vmem:[%s205 + $0x4a0] sm:$0x33]
        %v401 = vld [vmem:[%s205 + $0x4a8] sm:$0x33]
        %v402 = vld [vmem:[%s205 + $0x4b0] sm:$0x33]
        %v403 = vld [vmem:[%s205 + $0x4b8] sm:$0x33]
        %v404 = vld [vmem:[%s215] sm:$0xff]
        %v406 = vperm.slane %v404, 0
        %v407 = vperm.slane %v404, 1
        %v408 = vperm.slane %v404, 2
        %v409 = vperm.slane %v404, 3
        %v410 = vperm.slane %v404, 4
        %v411 = vperm.slane %v404, 5
        %v412 = vperm.slane %v404, 6
        %v413 = vperm.slane %v404, 7
        %v426 = vunpack.c.l.b16 %v248
        %v427 = vunpack.c.h.b16 %v248
        %v428 = vunpack.c.l.b16 %v249
        %v429 = vunpack.c.l.b16 %v250
        %v430 = vunpack.c.h.b16 %v250
        %v431 = vunpack.c.l.b16 %v251
        %v432 = vpack.c.b16 %v429, %v426
        %v433 = vpack.c.b16 %v430, %v427
        %v434 = vpack.c.b16 %v431, %v428
        %v589 = vunpack.c.l.b16 %v252
        %v590 = vunpack.c.h.b16 %v252
        %v591 = vunpack.c.l.b16 %v253
        %v592 = vunpack.c.h.b16 %v253
        %v593 = vunpack.c.l.b16 %v254
        %v594 = vunpack.c.h.b16 %v254
        %v595 = vunpack.c.l.b16 %v255
        %v596 = vunpack.c.h.b16 %v255
        %v597 = vunpack.c.l.b16 %v256
        %v598 = vunpack.c.h.b16 %v256
        %v599 = vunpack.c.l.b16 %v257
        %v600 = vunpack.c.h.b16 %v257
        %v601 = vunpack.c.l.b16 %v258
        %v602 = vunpack.c.h.b16 %v258
        %v603 = vunpack.c.l.b16 %v259
        %v604 = vunpack.c.h.b16 %v259
        %v605 = vunpack.c.l.b16 %v260
        %v606 = vunpack.c.h.b16 %v260
        %v607 = vunpack.c.l.b16 %v261
        %v608 = vunpack.c.h.b16 %v261
        %v609 = vunpack.c.l.b16 %v262
        %v610 = vunpack.c.h.b16 %v262
        %v611 = vunpack.c.l.b16 %v263
        %v612 = vunpack.c.h.b16 %v263
        %v613 = vunpack.c.l.b16 %v264
        %v614 = vunpack.c.h.b16 %v264
        %v615 = vunpack.c.l.b16 %v265
        %v616 = vunpack.c.h.b16 %v265
        %v617 = vunpack.c.l.b16 %v266
        %v618 = vunpack.c.h.b16 %v266
        %v619 = vunpack.c.l.b16 %v267
        %v620 = vunpack.c.h.b16 %v267
        %v621 = vunpack.c.l.b16 %v268
        %v622 = vunpack.c.h.b16 %v268
        %v623 = vunpack.c.l.b16 %v269
        %v624 = vunpack.c.h.b16 %v269
        %v625 = vunpack.c.l.b16 %v270
        %v626 = vunpack.c.h.b16 %v270
        %v627 = vunpack.c.l.b16 %v271
        %v628 = vunpack.c.h.b16 %v271
        %v629 = vunpack.c.l.b16 %v272
        %v630 = vunpack.c.h.b16 %v272
        %v631 = vunpack.c.l.b16 %v273
        %v632 = vunpack.c.h.b16 %v273
        %v633 = vunpack.c.l.b16 %v274
        %v634 = vunpack.c.h.b16 %v274
        %v635 = vunpack.c.l.b16 %v275
        %v636 = vunpack.c.h.b16 %v275
        %v637 = vunpack.c.l.b16 %v276
        %v638 = vunpack.c.h.b16 %v276
        %v639 = vunpack.c.l.b16 %v277
        %v640 = vunpack.c.h.b16 %v277
        %v641 = vunpack.c.l.b16 %v278
        %v642 = vunpack.c.h.b16 %v278
        %v643 = vunpack.c.l.b16 %v279
        %v644 = vunpack.c.h.b16 %v279
        %v645 = vunpack.c.l.b16 %v280
        %v646 = vunpack.c.h.b16 %v280
        %v647 = vunpack.c.l.b16 %v281
        %v648 = vunpack.c.h.b16 %v281
        %v649 = vunpack.c.l.b16 %v282
        %v650 = vunpack.c.h.b16 %v282
        %v651 = vunpack.c.l.b16 %v283
        %v652 = vunpack.c.h.b16 %v283
        %v653 = vunpack.c.l.b16 %v284
        %v654 = vunpack.c.h.b16 %v284
        %v655 = vunpack.c.l.b16 %v285
        %v656 = vunpack.c.h.b16 %v285
        %v657 = vunpack.c.l.b16 %v286
        %v658 = vunpack.c.h.b16 %v286
        %v659 = vunpack.c.l.b16 %v287
        %v660 = vunpack.c.h.b16 %v287
        %v661 = vunpack.c.l.b16 %v288
        %v662 = vunpack.c.h.b16 %v288
        %v663 = vunpack.c.l.b16 %v289
        %v664 = vunpack.c.h.b16 %v289
        %v665 = vunpack.c.l.b16 %v290
        %v666 = vunpack.c.h.b16 %v290
        %v667 = vunpack.c.l.b16 %v291
        %v668 = vunpack.c.h.b16 %v291
        %v669 = vunpack.c.l.b16 %v292
        %v670 = vunpack.c.h.b16 %v292
        %v671 = vunpack.c.l.b16 %v293
        %v672 = vunpack.c.h.b16 %v293
        %v673 = vunpack.c.l.b16 %v294
        %v674 = vunpack.c.h.b16 %v294
        %v675 = vunpack.c.l.b16 %v295
        %v676 = vunpack.c.h.b16 %v295
        %v677 = vunpack.c.l.b16 %v296
        %v678 = vunpack.c.h.b16 %v296
        %v679 = vunpack.c.l.b16 %v297
        %v680 = vunpack.c.h.b16 %v297
        %v681 = vunpack.c.l.b16 %v298
        %v682 = vunpack.c.h.b16 %v298
        %v683 = vunpack.c.l.b16 %v299
        %v684 = vunpack.c.h.b16 %v299
        %v685 = vunpack.c.l.b16 %v300
        %v686 = vunpack.c.h.b16 %v300
        %v687 = vunpack.c.l.b16 %v301
        %v688 = vunpack.c.h.b16 %v301
        %v689 = vunpack.c.l.b16 %v302
        %v690 = vunpack.c.h.b16 %v302
        %v691 = vunpack.c.l.b16 %v303
        %v692 = vunpack.c.h.b16 %v303
        %v693 = vunpack.c.l.b16 %v304
        %v694 = vunpack.c.h.b16 %v304
        %v695 = vunpack.c.l.b16 %v305
        %v696 = vunpack.c.h.b16 %v305
        %v697 = vunpack.c.l.b16 %v306
        %v698 = vunpack.c.h.b16 %v306
        %v699 = vunpack.c.l.b16 %v307
        %v700 = vunpack.c.h.b16 %v307
        %v701 = vunpack.c.l.b16 %v308
        %v702 = vunpack.c.h.b16 %v308
        %v703 = vunpack.c.l.b16 %v309
        %v704 = vunpack.c.h.b16 %v309
        %v705 = vunpack.c.l.b16 %v310
        %v706 = vunpack.c.h.b16 %v310
        %v707 = vunpack.c.l.b16 %v311
        %v708 = vunpack.c.h.b16 %v311
        %v709 = vunpack.c.l.b16 %v312
        %v710 = vunpack.c.h.b16 %v312
        %v711 = vunpack.c.l.b16 %v313
        %v712 = vunpack.c.h.b16 %v313
        %v713 = vunpack.c.l.b16 %v314
        %v714 = vunpack.c.h.b16 %v314
        %v715 = vunpack.c.l.b16 %v315
        %v716 = vunpack.c.h.b16 %v315
        %v717 = vunpack.c.l.b16 %v316
        %v718 = vunpack.c.h.b16 %v316
        %v719 = vunpack.c.l.b16 %v317
        %v720 = vunpack.c.h.b16 %v317
        %v721 = vunpack.c.l.b16 %v318
        %v722 = vunpack.c.h.b16 %v318
        %v723 = vunpack.c.l.b16 %v319
        %v724 = vunpack.c.h.b16 %v319
        %v725 = vunpack.c.l.b16 %v320
        %v726 = vunpack.c.h.b16 %v320
        %v727 = vunpack.c.l.b16 %v321
        %v728 = vunpack.c.h.b16 %v321
        %v729 = vunpack.c.l.b16 %v322
        %v730 = vunpack.c.h.b16 %v322
        %v731 = vunpack.c.l.b16 %v323
        %v732 = vunpack.c.h.b16 %v323
        %v733 = vunpack.c.l.b16 %v324
        %v734 = vunpack.c.h.b16 %v324
        %v735 = vunpack.c.l.b16 %v325
        %v736 = vunpack.c.h.b16 %v325
        %v737 = vunpack.c.l.b16 %v326
        %v738 = vunpack.c.h.b16 %v326
        %v739 = vunpack.c.l.b16 %v327
        %v740 = vunpack.c.h.b16 %v327
        %v741 = vunpack.c.l.b16 %v328
        %v742 = vunpack.c.h.b16 %v328
        %v743 = vunpack.c.l.b16 %v329
        %v744 = vunpack.c.h.b16 %v329
        %v745 = vunpack.c.l.b16 %v330
        %v746 = vunpack.c.h.b16 %v330
        %v747 = vunpack.c.l.b16 %v331
        %v748 = vunpack.c.h.b16 %v331
        %v749 = vunpack.c.l.b16 %v332
        %v750 = vunpack.c.h.b16 %v332
        %v751 = vunpack.c.l.b16 %v333
        %v752 = vunpack.c.h.b16 %v333
        %v753 = vunpack.c.l.b16 %v334
        %v754 = vunpack.c.h.b16 %v334
        %v755 = vunpack.c.l.b16 %v335
        %v756 = vunpack.c.h.b16 %v335
        %v757 = vunpack.c.l.b16 %v336
        %v758 = vunpack.c.h.b16 %v336
        %v759 = vunpack.c.l.b16 %v337
        %v760 = vunpack.c.h.b16 %v337
        %v761 = vunpack.c.l.b16 %v338
        %v762 = vunpack.c.h.b16 %v338
        %v763 = vunpack.c.l.b16 %v339
        %v764 = vunpack.c.h.b16 %v339
        %v765 = vunpack.c.l.b16 %v340
        %v766 = vunpack.c.h.b16 %v340
        %v767 = vunpack.c.l.b16 %v341
        %v768 = vunpack.c.h.b16 %v341
        %v769 = vunpack.c.l.b16 %v342
        %v770 = vunpack.c.h.b16 %v342
        %v771 = vunpack.c.l.b16 %v343
        %v772 = vunpack.c.h.b16 %v343
        %v773 = vunpack.c.l.b16 %v344
        %v774 = vunpack.c.h.b16 %v344
        %v775 = vunpack.c.l.b16 %v345
        %v776 = vunpack.c.h.b16 %v345
        %v777 = vunpack.c.l.b16 %v346
        %v778 = vunpack.c.h.b16 %v346
        %v779 = vunpack.c.l.b16 %v347
        %v780 = vunpack.c.h.b16 %v347
        %v781 = vunpack.c.l.b16 %v348
        %v782 = vunpack.c.h.b16 %v348
        %v783 = vunpack.c.l.b16 %v349
        %v784 = vunpack.c.h.b16 %v349
        %v785 = vunpack.c.l.b16 %v350
        %v786 = vunpack.c.h.b16 %v350
        %v787 = vunpack.c.l.b16 %v351
        %v788 = vunpack.c.h.b16 %v351
        %v789 = vunpack.c.l.b16 %v352
        %v790 = vunpack.c.h.b16 %v352
        %v791 = vunpack.c.l.b16 %v353
        %v792 = vunpack.c.h.b16 %v353
        %v793 = vunpack.c.l.b16 %v354
        %v794 = vunpack.c.h.b16 %v354
        %v795 = vunpack.c.l.b16 %v355
        %v796 = vunpack.c.h.b16 %v355
        %v797 = vunpack.c.l.b16 %v356
        %v798 = vunpack.c.h.b16 %v356
        %v799 = vunpack.c.l.b16 %v357
        %v800 = vunpack.c.h.b16 %v357
        %v801 = vunpack.c.l.b16 %v358
        %v802 = vunpack.c.h.b16 %v358
        %v803 = vunpack.c.l.b16 %v359
        %v804 = vunpack.c.h.b16 %v359
        %v805 = vunpack.c.l.b16 %v360
        %v806 = vunpack.c.h.b16 %v360
        %v807 = vunpack.c.l.b16 %v361
        %v808 = vunpack.c.h.b16 %v361
        %v809 = vunpack.c.l.b16 %v362
        %v810 = vunpack.c.h.b16 %v362
        %v811 = vunpack.c.l.b16 %v363
        %v812 = vunpack.c.h.b16 %v363
        %v813 = vunpack.c.l.b16 %v364
        %v814 = vunpack.c.h.b16 %v364
        %v815 = vunpack.c.l.b16 %v365
        %v816 = vunpack.c.h.b16 %v365
        %v817 = vunpack.c.l.b16 %v366
        %v818 = vunpack.c.h.b16 %v366
        %v819 = vunpack.c.l.b16 %v367
        %v820 = vunpack.c.h.b16 %v367
        %v821 = vunpack.c.l.b16 %v368
        %v822 = vunpack.c.h.b16 %v368
        %v823 = vunpack.c.l.b16 %v369
        %v824 = vunpack.c.h.b16 %v369
        %v825 = vunpack.c.l.b16 %v370
        %v826 = vunpack.c.h.b16 %v370
        %v827 = vunpack.c.l.b16 %v371
        %v828 = vunpack.c.h.b16 %v371
        %v829 = vunpack.c.l.b16 %v372
        %v830 = vunpack.c.h.b16 %v372
        %v831 = vunpack.c.l.b16 %v373
        %v832 = vunpack.c.h.b16 %v373
        %v833 = vunpack.c.l.b16 %v374
        %v834 = vunpack.c.h.b16 %v374
        %v835 = vunpack.c.l.b16 %v375
        %v836 = vunpack.c.h.b16 %v375
        %v837 = vunpack.c.l.b16 %v376
        %v838 = vunpack.c.h.b16 %v376
        %v839 = vunpack.c.l.b16 %v377
        %v840 = vunpack.c.h.b16 %v377
        %v841 = vunpack.c.l.b16 %v378
        %v842 = vunpack.c.h.b16 %v378
        %v843 = vunpack.c.l.b16 %v379
        %v844 = vunpack.c.h.b16 %v379
        %v845 = vunpack.c.l.b16 %v380
        %v846 = vunpack.c.h.b16 %v380
        %v847 = vunpack.c.l.b16 %v381
        %v848 = vunpack.c.h.b16 %v381
        %v849 = vunpack.c.l.b16 %v382
        %v850 = vunpack.c.h.b16 %v382
        %v851 = vunpack.c.l.b16 %v383
        %v852 = vunpack.c.h.b16 %v383
        %v853 = vunpack.c.l.b16 %v384
        %v854 = vunpack.c.h.b16 %v384
        %v855 = vunpack.c.l.b16 %v385
        %v856 = vunpack.c.h.b16 %v385
        %v857 = vunpack.c.l.b16 %v386
        %v858 = vunpack.c.h.b16 %v386
        %v859 = vunpack.c.l.b16 %v387
        %v860 = vunpack.c.h.b16 %v387
        %v861 = vunpack.c.l.b16 %v388
        %v862 = vunpack.c.h.b16 %v388
        %v863 = vunpack.c.l.b16 %v389
        %v864 = vunpack.c.h.b16 %v389
        %v865 = vunpack.c.l.b16 %v390
        %v866 = vunpack.c.h.b16 %v390
        %v867 = vunpack.c.l.b16 %v391
        %v868 = vunpack.c.h.b16 %v391
        %v869 = vunpack.c.l.b16 %v392
        %v870 = vunpack.c.h.b16 %v392
        %v871 = vunpack.c.l.b16 %v393
        %v872 = vunpack.c.h.b16 %v393
        %v873 = vunpack.c.l.b16 %v394
        %v874 = vunpack.c.h.b16 %v394
        %v875 = vunpack.c.l.b16 %v395
        %v876 = vunpack.c.h.b16 %v395
        %v877 = vunpack.c.l.b16 %v396
        %v878 = vunpack.c.h.b16 %v396
        %v879 = vunpack.c.l.b16 %v397
        %v880 = vunpack.c.h.b16 %v397
        %v881 = vunpack.c.l.b16 %v398
        %v882 = vunpack.c.h.b16 %v398
        %v883 = vunpack.c.l.b16 %v399
        %v884 = vunpack.c.h.b16 %v399
        %v885 = vunpack.c.l.b16 %v400
        %v886 = vunpack.c.h.b16 %v400
        %v887 = vunpack.c.l.b16 %v401
        %v888 = vunpack.c.h.b16 %v401
        %v889 = vunpack.c.l.b16 %v402
        %v890 = vunpack.c.h.b16 %v402
        %v891 = vunpack.c.l.b16 %v403
        %v892 = vunpack.c.h.b16 %v403
        %v893 = vpack.c.b16 %v597, %v589
        %v894 = vpack.c.b16 %v598, %v590
        %v895 = vpack.c.b16 %v599, %v591
        %v896 = vpack.c.b16 %v600, %v592
        %v897 = vpack.c.b16 %v601, %v593
        %v898 = vpack.c.b16 %v602, %v594
        %v899 = vpack.c.b16 %v603, %v595
        %v900 = vpack.c.b16 %v604, %v596
        %v901 = vpack.c.b16 %v613, %v605
        %v902 = vpack.c.b16 %v614, %v606
        %v903 = vpack.c.b16 %v615, %v607
        %v904 = vpack.c.b16 %v616, %v608
        %v905 = vpack.c.b16 %v617, %v609
        %v906 = vpack.c.b16 %v618, %v610
        %v907 = vpack.c.b16 %v619, %v611
        %v908 = vpack.c.b16 %v620, %v612
        %v909 = vpack.c.b16 %v629, %v621
        %v910 = vpack.c.b16 %v630, %v622
        %v911 = vpack.c.b16 %v631, %v623
        %v912 = vpack.c.b16 %v632, %v624
        %v913 = vpack.c.b16 %v633, %v625
        %v914 = vpack.c.b16 %v634, %v626
        %v915 = vpack.c.b16 %v635, %v627
        %v916 = vpack.c.b16 %v636, %v628
        %v917 = vpack.c.b16 %v645, %v637
        %v918 = vpack.c.b16 %v646, %v638
        %v919 = vpack.c.b16 %v647, %v639
        %v920 = vpack.c.b16 %v648, %v640
        %v921 = vpack.c.b16 %v649, %v641
        %v922 = vpack.c.b16 %v650, %v642
        %v923 = vpack.c.b16 %v651, %v643
        %v924 = vpack.c.b16 %v652, %v644
        %v925 = vpack.c.b16 %v661, %v653
        %v926 = vpack.c.b16 %v662, %v654
        %v927 = vpack.c.b16 %v663, %v655
        %v928 = vpack.c.b16 %v664, %v656
        %v929 = vpack.c.b16 %v665, %v657
        %v930 = vpack.c.b16 %v666, %v658
        %v931 = vpack.c.b16 %v667, %v659
        %v932 = vpack.c.b16 %v668, %v660
        %v933 = vpack.c.b16 %v677, %v669
        %v934 = vpack.c.b16 %v678, %v670
        %v935 = vpack.c.b16 %v679, %v671
        %v936 = vpack.c.b16 %v680, %v672
        %v937 = vpack.c.b16 %v681, %v673
        %v938 = vpack.c.b16 %v682, %v674
        %v939 = vpack.c.b16 %v683, %v675
        %v940 = vpack.c.b16 %v684, %v676
        %v941 = vpack.c.b16 %v693, %v685
        %v942 = vpack.c.b16 %v694, %v686
        %v943 = vpack.c.b16 %v695, %v687
        %v944 = vpack.c.b16 %v696, %v688
        %v945 = vpack.c.b16 %v697, %v689
        %v946 = vpack.c.b16 %v698, %v690
        %v947 = vpack.c.b16 %v699, %v691
        %v948 = vpack.c.b16 %v700, %v692
        %v949 = vpack.c.b16 %v709, %v701
        %v950 = vpack.c.b16 %v710, %v702
        %v951 = vpack.c.b16 %v711, %v703
        %v952 = vpack.c.b16 %v712, %v704
        %v953 = vpack.c.b16 %v713, %v705
        %v954 = vpack.c.b16 %v714, %v706
        %v955 = vpack.c.b16 %v715, %v707
        %v956 = vpack.c.b16 %v716, %v708
        %v957 = vpack.c.b16 %v725, %v717
        %v958 = vpack.c.b16 %v726, %v718
        %v959 = vpack.c.b16 %v727, %v719
        %v960 = vpack.c.b16 %v728, %v720
        %v961 = vpack.c.b16 %v729, %v721
        %v962 = vpack.c.b16 %v730, %v722
        %v963 = vpack.c.b16 %v731, %v723
        %v964 = vpack.c.b16 %v732, %v724
        %v965 = vpack.c.b16 %v741, %v733
        %v966 = vpack.c.b16 %v742, %v734
        %v967 = vpack.c.b16 %v743, %v735
        %v968 = vpack.c.b16 %v744, %v736
        %v969 = vpack.c.b16 %v745, %v737
        %v970 = vpack.c.b16 %v746, %v738
        %v971 = vpack.c.b16 %v747, %v739
        %v972 = vpack.c.b16 %v748, %v740
        %v973 = vpack.c.b16 %v757, %v749
        %v974 = vpack.c.b16 %v758, %v750
        %v975 = vpack.c.b16 %v759, %v751
        %v976 = vpack.c.b16 %v760, %v752
        %v977 = vpack.c.b16 %v761, %v753
        %v978 = vpack.c.b16 %v762, %v754
        %v979 = vpack.c.b16 %v763, %v755
        %v980 = vpack.c.b16 %v764, %v756
        %v981 = vpack.c.b16 %v773, %v765
        %v982 = vpack.c.b16 %v774, %v766
        %v983 = vpack.c.b16 %v775, %v767
        %v984 = vpack.c.b16 %v776, %v768
        %v985 = vpack.c.b16 %v777, %v769
        %v986 = vpack.c.b16 %v778, %v770
        %v987 = vpack.c.b16 %v779, %v771
        %v988 = vpack.c.b16 %v780, %v772
        %v989 = vpack.c.b16 %v789, %v781
        %v990 = vpack.c.b16 %v790, %v782
        %v991 = vpack.c.b16 %v791, %v783
        %v992 = vpack.c.b16 %v792, %v784
        %v993 = vpack.c.b16 %v793, %v785
        %v994 = vpack.c.b16 %v794, %v786
        %v995 = vpack.c.b16 %v795, %v787
        %v996 = vpack.c.b16 %v796, %v788
        %v997 = vpack.c.b16 %v805, %v797
        %v998 = vpack.c.b16 %v806, %v798
        %v999 = vpack.c.b16 %v807, %v799
        %v1000 = vpack.c.b16 %v808, %v800
        %v1001 = vpack.c.b16 %v809, %v801
        %v1002 = vpack.c.b16 %v810, %v802
        %v1003 = vpack.c.b16 %v811, %v803
        %v1004 = vpack.c.b16 %v812, %v804
        %v1005 = vpack.c.b16 %v821, %v813
        %v1006 = vpack.c.b16 %v822, %v814
        %v1007 = vpack.c.b16 %v823, %v815
        %v1008 = vpack.c.b16 %v824, %v816
        %v1009 = vpack.c.b16 %v825, %v817
        %v1010 = vpack.c.b16 %v826, %v818
        %v1011 = vpack.c.b16 %v827, %v819
        %v1012 = vpack.c.b16 %v828, %v820
        %v1013 = vpack.c.b16 %v837, %v829
        %v1014 = vpack.c.b16 %v838, %v830
        %v1015 = vpack.c.b16 %v839, %v831
        %v1016 = vpack.c.b16 %v840, %v832
        %v1017 = vpack.c.b16 %v841, %v833
        %v1018 = vpack.c.b16 %v842, %v834
        %v1019 = vpack.c.b16 %v843, %v835
        %v1020 = vpack.c.b16 %v844, %v836
        %v1021 = vpack.c.b16 %v853, %v845
        %v1022 = vpack.c.b16 %v854, %v846
        %v1023 = vpack.c.b16 %v855, %v847
        %v1024 = vpack.c.b16 %v856, %v848
        %v1025 = vpack.c.b16 %v857, %v849
        %v1026 = vpack.c.b16 %v858, %v850
        %v1027 = vpack.c.b16 %v859, %v851
        %v1028 = vpack.c.b16 %v860, %v852
        %v1029 = vpack.c.b16 %v869, %v861
        %v1030 = vpack.c.b16 %v870, %v862
        %v1031 = vpack.c.b16 %v871, %v863
        %v1032 = vpack.c.b16 %v872, %v864
        %v1033 = vpack.c.b16 %v873, %v865
        %v1034 = vpack.c.b16 %v874, %v866
        %v1035 = vpack.c.b16 %v875, %v867
        %v1036 = vpack.c.b16 %v876, %v868
        %v1037 = vpack.c.b16 %v885, %v877
        %v1038 = vpack.c.b16 %v886, %v878
        %v1039 = vpack.c.b16 %v887, %v879
        %v1040 = vpack.c.b16 %v888, %v880
        %v1041 = vpack.c.b16 %v889, %v881
        %v1042 = vpack.c.b16 %v890, %v882
        %v1043 = vpack.c.b16 %v891, %v883
        %v1044 = vpack.c.b16 %v892, %v884
        %vm1189 = vcmask 359424
        %v1191 = vsel %vm1189, %v434, 0
        %vm1193 = vcmask 1045504
        %v1195 = vsel %vm1193, %v1037, 0
        %v1198 = vsel %vm1193, %v1038, 0
        %v1201 = vsel %vm1193, %v1039, 0
        %v1204 = vsel %vm1193, %v1040, 0
        %v1207 = vsel %vm1193, %v1041, 0
        %v1210 = vsel %vm1193, %v1042, 0
        %v1213 = vsel %vm1193, %v1043, 0
        %v1216 = vsel %vm1193, %v1044, 0
        %1218 = vmatpush.bf16.msra.mxu0 %v949
        %1219 = vmatpush.bf16.msra.mxu0 %v941
        %1220 = vmatpush.bf16.msra.mxu0 %v933
        %1221 = vmatpush.bf16.msra.mxu0 %v925
        %1222 = vmatpush.bf16.msra.mxu0 %v917
        %1223 = vmatpush.bf16.msra.mxu0 %v909
        %1224 = vmatpush.bf16.msra.mxu0 %v901
        %1225 = vmatpush.bf16.msra.mxu0 %v893
        %1226 = vmatmul.bf16.gmra.mxu0 %v432
        %v1227 = vpop.f32.mrf.mxu0
        %v1228 = vadd.f32 %v406, %v1227
        %v1229 = vpop.f32.mrf.mxu0
        %v1230 = vadd.f32 %v406, %v1229
        %1231 = vdwg.mxu0
        %1232 = vmatpush.bf16.msra.mxu0 %v1013
        %1233 = vmatpush.bf16.msra.mxu0 %v1005
        %1234 = vmatpush.bf16.msra.mxu0 %v997
        %1235 = vmatpush.bf16.msra.mxu0 %v989
        %1236 = vmatpush.bf16.msra.mxu0 %v981
        %1237 = vmatpush.bf16.msra.mxu0 %v973
        %1238 = vmatpush.bf16.msra.mxu0 %v965
        %1239 = vmatpush.bf16.msra.mxu0 %v957
        %1240 = vmatmul.bf16.gmra.mxu0 %v433
        %v1241 = vpop.f32.mrf.mxu0
        %v1242 = vadd.f32 %v1228, %v1241
        %v1243 = vpop.f32.mrf.mxu0
        %v1244 = vadd.f32 %v1230, %v1243
        %1245 = vdwg.mxu0
        %1246 = vmatpush.bf16.msra.mxu0 0
        %1247 = vmatpush.bf16.msra.mxu0 0
        %1248 = vmatpush.bf16.msra.mxu0 0
        %1249 = vmatpush.bf16.msra.mxu0 0
        %1250 = vmatpush.bf16.msra.mxu0 0
        %1251 = vmatpush.bf16.msra.mxu0 %v1195
        %1252 = vmatpush.bf16.msra.mxu0 %v1029
        %1253 = vmatpush.bf16.msra.mxu0 %v1021
        %1254 = vmatmul.bf16.gmra.mxu0 %v1191
        %v1255 = vpop.f32.mrf.mxu0
        %v1256 = vadd.f32 %v1242, %v1255
        %v1257 = vpop.f32.mrf.mxu0
        %v1258 = vadd.f32 %v1244, %v1257
        %1259 = vdwg.mxu0
        %1260 = vmatpush.bf16.msra.mxu0 %v950
        %1261 = vmatpush.bf16.msra.mxu0 %v942
        %1262 = vmatpush.bf16.msra.mxu0 %v934
        %1263 = vmatpush.bf16.msra.mxu0 %v926
        %1264 = vmatpush.bf16.msra.mxu0 %v918
        %1265 = vmatpush.bf16.msra.mxu0 %v910
        %1266 = vmatpush.bf16.msra.mxu0 %v902
        %1267 = vmatpush.bf16.msra.mxu0 %v894
        %1268 = vmatmul.bf16.gmra.mxu0 %v432
        %v1269 = vpop.f32.mrf.mxu0
        %v1270 = vadd.f32 %v407, %v1269
        %v1271 = vpop.f32.mrf.mxu0
        %v1272 = vadd.f32 %v407, %v1271
        %1273 = vdwg.mxu0
        %1274 = vmatpush.bf16.msra.mxu0 %v1014
        %1275 = vmatpush.bf16.msra.mxu0 %v1006
        %1276 = vmatpush.bf16.msra.mxu0 %v998
        %1277 = vmatpush.bf16.msra.mxu0 %v990
        %1278 = vmatpush.bf16.msra.mxu0 %v982
        %1279 = vmatpush.bf16.msra.mxu0 %v974
        %1280 = vmatpush.bf16.msra.mxu0 %v966
        %1281 = vmatpush.bf16.msra.mxu0 %v958
        %1282 = vmatmul.bf16.gmra.mxu0 %v433
        %v1283 = vpop.f32.mrf.mxu0
        %v1284 = vadd.f32 %v1270, %v1283
        %v1285 = vpop.f32.mrf.mxu0
        %v1286 = vadd.f32 %v1272, %v1285
        %1287 = vdwg.mxu0
        %1288 = vmatpush.bf16.msra.mxu0 0
        %1289 = vmatpush.bf16.msra.mxu0 0
        %1290 = vmatpush.bf16.msra.mxu0 0
        %1291 = vmatpush.bf16.msra.mxu0 0
        %1292 = vmatpush.bf16.msra.mxu0 0
        %1293 = vmatpush.bf16.msra.mxu0 %v1198
        %1294 = vmatpush.bf16.msra.mxu0 %v1030
        %1295 = vmatpush.bf16.msra.mxu0 %v1022
        %1296 = vmatmul.bf16.gmra.mxu0 %v1191
        %v1297 = vpop.f32.mrf.mxu0
        %v1298 = vadd.f32 %v1284, %v1297
        %v1299 = vpop.f32.mrf.mxu0
        %v1300 = vadd.f32 %v1286, %v1299
        %1301 = vdwg.mxu0
        %1302 = vmatpush.bf16.msra.mxu0 %v951
        %1303 = vmatpush.bf16.msra.mxu0 %v943
        %1304 = vmatpush.bf16.msra.mxu0 %v935
        %1305 = vmatpush.bf16.msra.mxu0 %v927
        %1306 = vmatpush.bf16.msra.mxu0 %v919
        %1307 = vmatpush.bf16.msra.mxu0 %v911
        %1308 = vmatpush.bf16.msra.mxu0 %v903
        %1309 = vmatpush.bf16.msra.mxu0 %v895
        %1310 = vmatmul.bf16.gmra.mxu0 %v432
        %v1311 = vpop.f32.mrf.mxu0
        %v1312 = vadd.f32 %v408, %v1311
        %v1313 = vpop.f32.mrf.mxu0
        %v1314 = vadd.f32 %v408, %v1313
        %1315 = vdwg.mxu0
        %1316 = vmatpush.bf16.msra.mxu0 %v1015
        %1317 = vmatpush.bf16.msra.mxu0 %v1007
        %1318 = vmatpush.bf16.msra.mxu0 %v999
        %1319 = vmatpush.bf16.msra.mxu0 %v991
        %1320 = vmatpush.bf16.msra.mxu0 %v983
        %1321 = vmatpush.bf16.msra.mxu0 %v975
        %1322 = vmatpush.bf16.msra.mxu0 %v967
        %1323 = vmatpush.bf16.msra.mxu0 %v959
        %1324 = vmatmul.bf16.gmra.mxu0 %v433
        %v1325 = vpop.f32.mrf.mxu0
        %v1326 = vadd.f32 %v1312, %v1325
        %v1327 = vpop.f32.mrf.mxu0
        %v1328 = vadd.f32 %v1314, %v1327
        %1329 = vdwg.mxu0
        %1330 = vmatpush.bf16.msra.mxu0 0
        %1331 = vmatpush.bf16.msra.mxu0 0
        %1332 = vmatpush.bf16.msra.mxu0 0
        %1333 = vmatpush.bf16.msra.mxu0 0
        %1334 = vmatpush.bf16.msra.mxu0 0
        %1335 = vmatpush.bf16.msra.mxu0 %v1201
        %1336 = vmatpush.bf16.msra.mxu0 %v1031
        %1337 = vmatpush.bf16.msra.mxu0 %v1023
        %1338 = vmatmul.bf16.gmra.mxu0 %v1191
        %v1339 = vpop.f32.mrf.mxu0
        %v1340 = vadd.f32 %v1326, %v1339
        %v1341 = vpop.f32.mrf.mxu0
        %v1342 = vadd.f32 %v1328, %v1341
        %1343 = vdwg.mxu0
        %1344 = vmatpush.bf16.msra.mxu0 %v952
        %1345 = vmatpush.bf16.msra.mxu0 %v944
        %1346 = vmatpush.bf16.msra.mxu0 %v936
        %1347 = vmatpush.bf16.msra.mxu0 %v928
        %1348 = vmatpush.bf16.msra.mxu0 %v920
        %1349 = vmatpush.bf16.msra.mxu0 %v912
        %1350 = vmatpush.bf16.msra.mxu0 %v904
        %1351 = vmatpush.bf16.msra.mxu0 %v896
        %1352 = vmatmul.bf16.gmra.mxu0 %v432
        %v1353 = vpop.f32.mrf.mxu0
        %v1354 = vadd.f32 %v409, %v1353
        %v1355 = vpop.f32.mrf.mxu0
        %v1356 = vadd.f32 %v409, %v1355
        %1357 = vdwg.mxu0
        %1358 = vmatpush.bf16.msra.mxu0 %v1016
        %1359 = vmatpush.bf16.msra.mxu0 %v1008
        %1360 = vmatpush.bf16.msra.mxu0 %v1000
        %1361 = vmatpush.bf16.msra.mxu0 %v992
        %1362 = vmatpush.bf16.msra.mxu0 %v984
        %1363 = vmatpush.bf16.msra.mxu0 %v976
        %1364 = vmatpush.bf16.msra.mxu0 %v968
        %1365 = vmatpush.bf16.msra.mxu0 %v960
        %1366 = vmatmul.bf16.gmra.mxu0 %v433
        %v1367 = vpop.f32.mrf.mxu0
        %v1368 = vadd.f32 %v1354, %v1367
        %v1369 = vpop.f32.mrf.mxu0
        %v1370 = vadd.f32 %v1356, %v1369
        %1371 = vdwg.mxu0
        %1372 = vmatpush.bf16.msra.mxu0 0
        %1373 = vmatpush.bf16.msra.mxu0 0
        %1374 = vmatpush.bf16.msra.mxu0 0
        %1375 = vmatpush.bf16.msra.mxu0 0
        %1376 = vmatpush.bf16.msra.mxu0 0
        %1377 = vmatpush.bf16.msra.mxu0 %v1204
        %1378 = vmatpush.bf16.msra.mxu0 %v1032
        %1379 = vmatpush.bf16.msra.mxu0 %v1024
        %1380 = vmatmul.bf16.gmra.mxu0 %v1191
        %v1381 = vpop.f32.mrf.mxu0
        %v1382 = vadd.f32 %v1368, %v1381
        %v1383 = vpop.f32.mrf.mxu0
        %v1384 = vadd.f32 %v1370, %v1383
        %1385 = vdwg.mxu0
        %1386 = vmatpush.bf16.msra.mxu0 %v953
        %1387 = vmatpush.bf16.msra.mxu0 %v945
        %1388 = vmatpush.bf16.msra.mxu0 %v937
        %1389 = vmatpush.bf16.msra.mxu0 %v929
        %1390 = vmatpush.bf16.msra.mxu0 %v921
        %1391 = vmatpush.bf16.msra.mxu0 %v913
        %1392 = vmatpush.bf16.msra.mxu0 %v905
        %1393 = vmatpush.bf16.msra.mxu0 %v897
        %1394 = vmatmul.bf16.gmra.mxu0 %v432
        %v1395 = vpop.f32.mrf.mxu0
        %v1396 = vadd.f32 %v410, %v1395
        %v1397 = vpop.f32.mrf.mxu0
        %v1398 = vadd.f32 %v410, %v1397
        %1399 = vdwg.mxu0
        %1400 = vmatpush.bf16.msra.mxu0 %v1017
        %1401 = vmatpush.bf16.msra.mxu0 %v1009
        %1402 = vmatpush.bf16.msra.mxu0 %v1001
        %1403 = vmatpush.bf16.msra.mxu0 %v993
        %1404 = vmatpush.bf16.msra.mxu0 %v985
        %1405 = vmatpush.bf16.msra.mxu0 %v977
        %1406 = vmatpush.bf16.msra.mxu0 %v969
        %1407 = vmatpush.bf16.msra.mxu0 %v961
        %1408 = vmatmul.bf16.gmra.mxu0 %v433
        %v1409 = vpop.f32.mrf.mxu0
        %v1410 = vadd.f32 %v1396, %v1409
        %v1411 = vpop.f32.mrf.mxu0
        %v1412 = vadd.f32 %v1398, %v1411
        %1413 = vdwg.mxu0
        %1414 = vmatpush.bf16.msra.mxu0 0
        %1415 = vmatpush.bf16.msra.mxu0 0
        %1416 = vmatpush.bf16.msra.mxu0 0
        %1417 = vmatpush.bf16.msra.mxu0 0
        %1418 = vmatpush.bf16.msra.mxu0 0
        %1419 = vmatpush.bf16.msra.mxu0 %v1207
        %1420 = vmatpush.bf16.msra.mxu0 %v1033
        %1421 = vmatpush.bf16.msra.mxu0 %v1025
        %1422 = vmatmul.bf16.gmra.mxu0 %v1191
        %v1423 = vpop.f32.mrf.mxu0
        %v1424 = vadd.f32 %v1410, %v1423
        %v1425 = vpop.f32.mrf.mxu0
        %v1426 = vadd.f32 %v1412, %v1425
        %1427 = vdwg.mxu0
        %1428 = vmatpush.bf16.msra.mxu0 %v954
        %1429 = vmatpush.bf16.msra.mxu0 %v946
        %1430 = vmatpush.bf16.msra.mxu0 %v938
        %1431 = vmatpush.bf16.msra.mxu0 %v930
        %1432 = vmatpush.bf16.msra.mxu0 %v922
        %1433 = vmatpush.bf16.msra.mxu0 %v914
        %1434 = vmatpush.bf16.msra.mxu0 %v906
        %1435 = vmatpush.bf16.msra.mxu0 %v898
        %1436 = vmatmul.bf16.gmra.mxu0 %v432
        %v1437 = vpop.f32.mrf.mxu0
        %v1438 = vadd.f32 %v411, %v1437
        %v1439 = vpop.f32.mrf.mxu0
        %v1440 = vadd.f32 %v411, %v1439
        %1441 = vdwg.mxu0
        %1442 = vmatpush.bf16.msra.mxu0 %v1018
        %1443 = vmatpush.bf16.msra.mxu0 %v1010
        %1444 = vmatpush.bf16.msra.mxu0 %v1002
        %1445 = vmatpush.bf16.msra.mxu0 %v994
        %1446 = vmatpush.bf16.msra.mxu0 %v986
        %1447 = vmatpush.bf16.msra.mxu0 %v978
        %1448 = vmatpush.bf16.msra.mxu0 %v970
        %1449 = vmatpush.bf16.msra.mxu0 %v962
        %1450 = vmatmul.bf16.gmra.mxu0 %v433
        %v1451 = vpop.f32.mrf.mxu0
        %v1452 = vadd.f32 %v1438, %v1451
        %v1453 = vpop.f32.mrf.mxu0
        %v1454 = vadd.f32 %v1440, %v1453
        %1455 = vdwg.mxu0
        %1456 = vmatpush.bf16.msra.mxu0 0
        %1457 = vmatpush.bf16.msra.mxu0 0
        %1458 = vmatpush.bf16.msra.mxu0 0
        %1459 = vmatpush.bf16.msra.mxu0 0
        %1460 = vmatpush.bf16.msra.mxu0 0
        %1461 = vmatpush.bf16.msra.mxu0 %v1210
        %1462 = vmatpush.bf16.msra.mxu0 %v1034
        %1463 = vmatpush.bf16.msra.mxu0 %v1026
        %1464 = vmatmul.bf16.gmra.mxu0 %v1191
        %v1465 = vpop.f32.mrf.mxu0
        %v1466 = vadd.f32 %v1452, %v1465
        %v1467 = vpop.f32.mrf.mxu0
        %v1468 = vadd.f32 %v1454, %v1467
        %1469 = vdwg.mxu0
        %1470 = vmatpush.bf16.msra.mxu0 %v955
        %1471 = vmatpush.bf16.msra.mxu0 %v947
        %1472 = vmatpush.bf16.msra.mxu0 %v939
        %1473 = vmatpush.bf16.msra.mxu0 %v931
        %1474 = vmatpush.bf16.msra.mxu0 %v923
        %1475 = vmatpush.bf16.msra.mxu0 %v915
        %1476 = vmatpush.bf16.msra.mxu0 %v907
        %1477 = vmatpush.bf16.msra.mxu0 %v899
        %1478 = vmatmul.bf16.gmra.mxu0 %v432
        %v1479 = vpop.f32.mrf.mxu0
        %v1480 = vadd.f32 %v412, %v1479
        %v1481 = vpop.f32.mrf.mxu0
        %v1482 = vadd.f32 %v412, %v1481
        %1483 = vdwg.mxu0
        %1484 = vmatpush.bf16.msra.mxu0 %v1019
        %1485 = vmatpush.bf16.msra.mxu0 %v1011
        %1486 = vmatpush.bf16.msra.mxu0 %v1003
        %1487 = vmatpush.bf16.msra.mxu0 %v995
        %1488 = vmatpush.bf16.msra.mxu0 %v987
        %1489 = vmatpush.bf16.msra.mxu0 %v979
        %1490 = vmatpush.bf16.msra.mxu0 %v971
        %1491 = vmatpush.bf16.msra.mxu0 %v963
        %1492 = vmatmul.bf16.gmra.mxu0 %v433
        %v1493 = vpop.f32.mrf.mxu0
        %v1494 = vadd.f32 %v1480, %v1493
        %v1495 = vpop.f32.mrf.mxu0
        %v1496 = vadd.f32 %v1482, %v1495
        %1497 = vdwg.mxu0
        %1498 = vmatpush.bf16.msra.mxu0 0
        %1499 = vmatpush.bf16.msra.mxu0 0
        %1500 = vmatpush.bf16.msra.mxu0 0
        %1501 = vmatpush.bf16.msra.mxu0 0
        %1502 = vmatpush.bf16.msra.mxu0 0
        %1503 = vmatpush.bf16.msra.mxu0 %v1213
        %1504 = vmatpush.bf16.msra.mxu0 %v1035
        %1505 = vmatpush.bf16.msra.mxu0 %v1027
        %1506 = vmatmul.bf16.gmra.mxu0 %v1191
        %v1507 = vpop.f32.mrf.mxu0
        %v1508 = vadd.f32 %v1494, %v1507
        %v1509 = vpop.f32.mrf.mxu0
        %v1510 = vadd.f32 %v1496, %v1509
        %1511 = vdwg.mxu0
        %1512 = vmatpush.bf16.msra.mxu0 %v956
        %1513 = vmatpush.bf16.msra.mxu0 %v948
        %1514 = vmatpush.bf16.msra.mxu0 %v940
        %1515 = vmatpush.bf16.msra.mxu0 %v932
        %1516 = vmatpush.bf16.msra.mxu0 %v924
        %1517 = vmatpush.bf16.msra.mxu0 %v916
        %1518 = vmatpush.bf16.msra.mxu0 %v908
        %1519 = vmatpush.bf16.msra.mxu0 %v900
        %1520 = vmatmul.bf16.gmra.mxu0 %v432
        %v1521 = vpop.f32.mrf.mxu0
        %v1522 = vadd.f32 %v413, %v1521
        %v1523 = vpop.f32.mrf.mxu0
        %v1524 = vadd.f32 %v413, %v1523
        %1525 = vdwg.mxu0
        %1526 = vmatpush.bf16.msra.mxu0 %v1020
        %1527 = vmatpush.bf16.msra.mxu0 %v1012
        %1528 = vmatpush.bf16.msra.mxu0 %v1004
        %1529 = vmatpush.bf16.msra.mxu0 %v996
        %1530 = vmatpush.bf16.msra.mxu0 %v988
        %1531 = vmatpush.bf16.msra.mxu0 %v980
        %1532 = vmatpush.bf16.msra.mxu0 %v972
        %1533 = vmatpush.bf16.msra.mxu0 %v964
        %1534 = vmatmul.bf16.gmra.mxu0 %v433
        %v1535 = vpop.f32.mrf.mxu0
        %v1536 = vadd.f32 %v1522, %v1535
        %v1537 = vpop.f32.mrf.mxu0
        %v1538 = vadd.f32 %v1524, %v1537
        %1539 = vdwg.mxu0
        %1540 = vmatpush.bf16.msra.mxu0 0
        %1541 = vmatpush.bf16.msra.mxu0 0
        %1542 = vmatpush.bf16.msra.mxu0 0
        %1543 = vmatpush.bf16.msra.mxu0 0
        %1544 = vmatpush.bf16.msra.mxu0 0
        %1545 = vmatpush.bf16.msra.mxu0 %v1216
        %1546 = vmatpush.bf16.msra.mxu0 %v1036
        %1547 = vmatpush.bf16.msra.mxu0 %v1028
        %1548 = vmatmul.bf16.gmra.mxu0 %v1191
        %v1549 = vpop.f32.mrf.mxu0
        %v1550 = vadd.f32 %v1536, %v1549
        %v1551 = vpop.f32.mrf.mxu0
        %v1552 = vadd.f32 %v1538, %v1551
        %1553 = vdwg.mxu0
        %1554 = vst [vmem:[%s243] sm:$0xff] %v1256
        %1555 = vst [vmem:[%s243 + $0x8] sm:$0xff] %v1298
        %1556 = vst [vmem:[%s243 + $0x10] sm:$0xff] %v1340
        %1557 = vst [vmem:[%s243 + $0x18] sm:$0xff] %v1382
        %1558 = vst [vmem:[%s243 + $0x20] sm:$0xff] %v1424
        %1559 = vst [vmem:[%s243 + $0x28] sm:$0xff] %v1466
        %1560 = vst [vmem:[%s243 + $0x30] sm:$0xff] %v1508
        %1561 = vst [vmem:[%s243 + $0x38] sm:$0xff] %v1550
        %1562 = vst [vmem:[%s243 + $0x40] sm:$0xff] %v1258
        %1563 = vst [vmem:[%s243 + $0x48] sm:$0xff] %v1300
        %1564 = vst [vmem:[%s243 + $0x50] sm:$0xff] %v1342
        %1565 = vst [vmem:[%s243 + $0x58] sm:$0xff] %v1384
        %1566 = vst [vmem:[%s243 + $0x60] sm:$0xff] %v1426
        %1567 = vst [vmem:[%s243 + $0x68] sm:$0xff] %v1468
        %1568 = vst [vmem:[%s243 + $0x70] sm:$0xff] %v1510
        %1569 = vst [vmem:[%s243 + $0x78] sm:$0xff] %v1552
        %s1570 = sand.u32 %s102, 1
        %s1571 = scalar_lea.sflag [#allocation4], %s1570
        %s1572 = sand.u32 %s102, 1
        %s1573 = smul.addr %s1572, 128
        %s1574 = scalar_lea.vmem [#allocation8], %s1573
        // Predicated region
        $region45: #{tpu_custom_call.1} parent=31 // pred_check
          %p1575 = pneg %p112
        $region46: #{tpu_custom_call.1} parent=31 // pred_check_branch
          %1577 = sbr.rel (%p1575) target = $region48
        $region47: #{tpu_custom_call.1} parent=31 // pred_region
          %s1578 = smul.u32 8, %s21
          %1580 = vsyncadd %s1571, 0
          %s1581 = smul.addr %s1578, 8
          %s1582 = scalar_lea.hbm %s3, %s1581
          %s1583 = sshll.u32 %s1574, 4
          %s1584 = int_to_ptr.vmem [resolvable:$true] %s1583
          %s1585 = sshll.u32 %s1582, 4
          %s1586 = int_to_ptr.hbm [resolvable:$true] %s1585
          %1591 = dma.vmem_to_hbm [thread:$0]  %s1584, 2048, %s1586, %s1571, 1024, 2048, 64
        $region48: #{tpu_custom_call.1} parent=31 // pred_fallthru
          _
      $region32: #{tpu_custom_call.1} parent=5 // pred_fallthru
        _
      %p1592 = scmp.le.s32.totalorder 2, %s16
      // Predicated region
      $region49: #{tpu_custom_call.1} parent=5 // pred_check
        %p1593 = pneg %p1592
      $region50: #{tpu_custom_call.1} parent=5 // pred_check_branch
        %1595 = sbr.rel (%p1593) target = $region52
      $region51: #{tpu_custom_call.1} parent=5 // pred_region
        %s1596 = ssub.s32 %s16, 2
        // Predicated region
        $region53: #{tpu_custom_call.1} parent=51 // pred_check
          %p1597 = pneg %p118
        $region54: #{tpu_custom_call.1} parent=51 // pred_check_branch
          %1599 = sbr.rel (%p1597) target = $region56
        $region55: #{tpu_custom_call.1} parent=51 // pred_region
          %s1600 = sand.u32 %s103, 1
          %s1601 = scalar_lea.sflag [#allocation4], %s1600
          %s1602 = sand.u32 %s103, 1
          %s1603 = smul.addr %s1602, 128
          %s1604 = scalar_lea.vmem [#allocation8], %s1603
          %1606 = dma.done %s1601, 2048
        $region56: #{tpu_custom_call.1} parent=51 // pred_fallthru
          _
      $region52: #{tpu_custom_call.1} parent=5 // pred_fallthru
        _
    $region6: #{tpu_custom_call.1} parent=1 // loop_footer
      %s20 = sadd.s32 1, %s16
    $region7: #{tpu_custom_call.1} parent=1 // loop_footer_branch
      %15 = sbr.rel target = $region3
    $region8: #{tpu_custom_call.1} parent=1 // loop_exit
      _
    %1607 = vsyncpa [#allocation3], 1
    %s1608 = scalar_lea.sflag [#allocation3], 1
    %1609 = vsyncpa %s1608, 1
    %1610 = vsyncpa [#allocation6], 1
    %s1611 = scalar_lea.sflag [#allocation6], 1
    %1612 = vsyncpa %s1611, 1
    %1613 = vsyncpa [#allocation4], 1
    %s1614 = scalar_lea.sflag [#allocation4], 1
    %1615 = vsyncpa %s1614, 1

</llo_original>
